<compile_context>
chip_gen: v5e
topology: v5e:2x2
jax: 0.10.0
libtpu: 0.0.40
codegen_flags: <defaults>
</compile_context>

<pallas_src>
from functools import partial

import jax
import jax.numpy as jnp
from jax.experimental import pallas as pl
from jax.experimental.pallas import tpu as pltpu


def _round_up(x, m):
    return (x + m - 1) // m * m


def _cdiv(a, b):
    return (a + b - 1) // b


# ------------------------- Fused single-pass kernel -------------------------
def _se_fused_kernel(x_ref, w1t_ref, w2_ref, o_ref, *, inv_hw):
    # x_ref/o_ref: (C, HW) native dtype; w1t_ref/w2_ref: (C, Cr).
    x = x_ref[...]

    # Global average pool over the spatial (lane) axis, f32 accumulation.
    pooled = jnp.sum(x.astype(jnp.float32), axis=-1, keepdims=True) * inv_hw  # (C, 1)

    w1t = w1t_ref[...].astype(jnp.float32)          # (C, Cr) == W1.T
    w2 = w2_ref[...].astype(jnp.float32)            # (C, Cr) == W2

    # fc1 + ReLU:  h[j] = relu(sum_c W1[j, c] * pooled[c])   -> (1, Cr)
    h = jnp.sum(w1t * pooled, axis=0, keepdims=True)
    h = jnp.maximum(h, 0.0)

    # fc2 + sigmoid: gate[c] = sigmoid(sum_j W2[c, j] * h[j]) -> (C, 1)
    z = jnp.sum(w2 * h, axis=-1, keepdims=True)
    gate = 1.0 / (1.0 + jnp.exp(-z))

    # Broadcast scale in native dtype (no f32 copy of the big slab for bf16).
    o_ref[...] = x * gate.astype(x.dtype)


def _se_fused(x3, w_fc1, w_fc2):
    B, C, HW = x3.shape
    Cr = w_fc1.shape[0]
    dbytes = jnp.dtype(x3.dtype).itemsize

    w1t = jnp.transpose(w_fc1)   # (C, Cr); tiny, host-side transpose is free
    w2 = w_fc2                   # (C, Cr)

    return pl.pallas_call(
        partial(_se_fused_kernel, inv_hw=1.0 / HW),
        out_shape=jax.ShapeDtypeStruct((B, C, HW), x3.dtype),
        grid_spec=pl.GridSpec(
            grid=(B,),
            in_specs=[
                pl.BlockSpec((None, C, HW), lambda b: (b, 0, 0)),
                pl.BlockSpec((C, Cr), lambda b: (0, 0)),
                pl.BlockSpec((C, Cr), lambda b: (0, 0)),
            ],
            out_specs=pl.BlockSpec((None, C, HW), lambda b: (b, 0, 0)),
        ),
        compiler_params=pltpu.CompilerParams(
            dimension_semantics=("parallel",),
            vmem_limit_bytes=32 * 1024 * 1024),
        cost_estimate=pl.CostEstimate(
            flops=2 * B * C * HW + 4 * B * C * Cr,
            transcendentals=B * C,
            bytes_accessed=2 * B * C * HW * dbytes + 2 * C * Cr * 4),
    )(x3, w1t, w2)


# ----------------------- Fallback pass 1: spatial sums ----------------------
def _pool_kernel(x_ref, sum_ref, *, hw, hw_tile, ragged):
    # x_ref: (ROW_TILE, HW_TILE) native dtype; sum_ref: (ROW_TILE, 1) f32.
    # Output block index is constant along the HW axis -> accumulator pattern.
    @pl.when(pl.program_id(1) == 0)
    def _():
        sum_ref[...] = jnp.zeros_like(sum_ref)

    x = x_ref[...].astype(jnp.float32)
    if ragged:
        # Zero the lanes past the true HW extent (last tile holds garbage).
        col = jax.lax.broadcasted_iota(jnp.int32, x.shape, 1) \
            + pl.program_id(1) * hw_tile
        x = jnp.where(col < hw, x, 0.0)
    sum_ref[...] += jnp.sum(x, axis=-1, keepdims=True)


# ----------------------- Fallback pass 2: x * gate --------------------------
def _scale_kernel(x_ref, g_ref, o_ref):
    # Native-dtype multiply; garbage in ragged-tail lanes/rows is written to
    # out-of-bounds regions of the output block and dropped by Pallas.
    o_ref[...] = x_ref[...] * g_ref[...]


def _se_two_pass(x3, w_fc1, w_fc2, *, max_row_tile, max_hw_tile):
    B, C, HW = x3.shape
    BC = B * C
    dbytes = jnp.dtype(x3.dtype).itemsize
    x2 = x3.reshape(BC, HW)

    # Tile picked first (no divisibility requirement); ragged tail is masked
    # in-kernel, so no host-side padding / un-padding traffic.
    hw_tile = min(max_hw_tile, _round_up(HW, 128))
    # Guarantee >= 2 row blocks when possible so both TCs (v7x) have work.
    row_tile = min(max_row_tile, max(8, _round_up(_cdiv(BC, 2), 8)))
    n_rows = _cdiv(BC, row_tile)
    n_hw = _cdiv(HW, hw_tile)
    ragged = (HW % hw_tile) != 0

    # ---- Pass 1: spatial sums -> (BC, 1) f32 -------------------------------
    sums = pl.pallas_call(
        partial(_pool_kernel, hw=HW, hw_tile=hw_tile, ragged=ragged),
        out_shape=jax.ShapeDtypeStruct((BC, 1), jnp.float32),
        grid_spec=pl.GridSpec(
            grid=(n_rows, n_hw),
            in_specs=[pl.BlockSpec((row_tile, hw_tile), lambda i, j: (i, j))],
            out_specs=pl.BlockSpec((row_tile, 1), lambda i, j: (i, 0)),
        ),
        compiler_params=pltpu.CompilerParams(
            dimension_semantics=("parallel", "arbitrary"),
            vmem_limit_bytes=32 * 1024 * 1024),
        cost_estimate=pl.CostEstimate(
            flops=BC * HW, transcendentals=0,
            bytes_accessed=BC * HW * dbytes + BC * 4),
    )(x2)

    # ---- Excitation MLP (tiny; plain JAX, f32) -----------------------------
    pooled = sums[:, 0].reshape(B, C) * (1.0 / HW)              # global avg pool
    h = jnp.maximum(pooled @ w_fc1.astype(jnp.float32).T, 0.0)  # Linear + ReLU
    gate = jax.nn.sigmoid(h @ w_fc2.astype(jnp.float32).T)      # Linear + Sigmoid
    gate2 = gate.reshape(BC, 1).astype(x3.dtype)

    # ---- Pass 2: x * gate (broadcast over spatial) -------------------------
    out2 = pl.pallas_call(
        _scale_kernel,
        out_shape=jax.ShapeDtypeStruct((BC, HW), x3.dtype),
        grid_spec=pl.GridSpec(
            grid=(n_rows, n_hw),
            in_specs=[
                pl.BlockSpec((row_tile, hw_tile), lambda i, j: (i, j)),
                pl.BlockSpec((row_tile, 1), lambda i, j: (i, 0)),
            ],
            out_specs=pl.BlockSpec((row_tile, hw_tile), lambda i, j: (i, j)),
        ),
        compiler_params=pltpu.CompilerParams(
            dimension_semantics=("parallel", "parallel"),
            vmem_limit_bytes=32 * 1024 * 1024),
        cost_estimate=pl.CostEstimate(
            flops=BC * HW, transcendentals=0,
            bytes_accessed=2 * BC * HW * dbytes + BC * dbytes),
    )(x2, gate2)

    return out2.reshape(B, C, HW)


# --------------------------------- Wrapper -----------------------------------
def se_block(x, w_fc1, w_fc2, *, max_fused_slab_bytes=4 * 1024 * 1024,
             max_row_tile=256, max_hw_tile=2048):
    """Squeeze-and-Excitation forward matching the PyTorch SE_block.

    x:     (B, C, H, W)
    w_fc1: (C//r, C)  -- nn.Linear(channel, channel // ratio, bias=False).weight
    w_fc2: (C, C//r)  -- nn.Linear(channel // ratio, channel, bias=False).weight
    """
    B, C, H, W = x.shape
    HW = H * W
    dbytes = jnp.dtype(x.dtype).itemsize
    x3 = x.reshape(B, C, HW)   # spatial on lanes, channels on sublanes

    slab_bytes = C * HW * dbytes
    if slab_bytes <= max_fused_slab_bytes:
        # Per-batch slab (and its double buffers) fit comfortably in VMEM.
        out3 = _se_fused(x3, w_fc1, w_fc2)
    else:
        out3 = _se_two_pass(x3, w_fc1, w_fc2,
                            max_row_tile=max_row_tile, max_hw_tile=max_hw_tile)
    return out3.reshape(B, C, H, W)


def se_block_ref(x, w_fc1, w_fc2):
    # Pure-JAX reference mirroring the PyTorch forward (fc layers: bias=False).
    y = jnp.mean(x, axis=(2, 3))                 # avg_pool(1).view(b, c)
    y = jnp.maximum(y @ w_fc1.T, 0.0)            # Linear + ReLU
    y = jax.nn.sigmoid(y @ w_fc2.T)              # Linear + Sigmoid
    return x * y[:, :, None, None]


if __name__ == "__main__":
    key = jax.random.PRNGKey(0)
    kx, k1, k2 = jax.random.split(key, 3)

    # Aligned small shape (batch=2, channels=4, spatial=16), ratio=1.
    B, C, H, W = 2, 4, 16, 16
    ratio = 1
    x = jax.random.normal(kx, (B, C, H, W), dtype=jnp.float32)
    w_fc1 = jax.random.normal(k1, (C // ratio, C), dtype=jnp.float32) * 0.5
    w_fc2 = jax.random.normal(k2, (C, C // ratio), dtype=jnp.float32) * 0.5
    ref = se_block_ref(x, w_fc1, w_fc2)

    # 1) Fused single-pass path (default).
    out = jax.block_until_ready(se_block(x, w_fc1, w_fc2))
    assert out.shape == (B, C, H, W)
    assert jnp.allclose(out, ref, atol=1e-5, rtol=1e-5), "fused mismatch"

    # 2) Forced two-pass fallback, multiple HW tiles (exercises accumulator).
    out_fb = jax.block_until_ready(
        se_block(x, w_fc1, w_fc2, max_fused_slab_bytes=0, max_hw_tile=128))
    assert jnp.allclose(out_fb, ref, atol=1e-5, rtol=1e-5), "fallback mismatch"

    # Ragged / non-(8,128)-aligned shapes.
    B2, C2, H2, W2 = 2, 5, 13, 13
    x_b = jax.random.normal(kx, (B2, C2, H2, W2), dtype=jnp.float32)
    w1_b = jax.random.normal(k1, (C2, C2), dtype=jnp.float32) * 0.5
    w2_b = jax.random.normal(k2, (C2, C2), dtype=jnp.float32) * 0.5
    ref_b = se_block_ref(x_b, w1_b, w2_b)

    # 3) Fused path on ragged shapes (full-extent blocks, no padding).
    out_b = jax.block_until_ready(se_block(x_b, w1_b, w2_b))
    assert jnp.allclose(out_b, ref_b, atol=1e-5, rtol=1e-5), "fused ragged mismatch"

    # 4) Forced fallback on ragged shapes with multiple HW tiles
    #    (exercises the in-kernel tail mask and partial row blocks).
    out_b_fb = jax.block_until_ready(
        se_block(x_b, w1_b, w2_b, max_fused_slab_bytes=0, max_hw_tile=128))
    assert jnp.allclose(out_b_fb, ref_b, atol=1e-5, rtol=1e-5), \
        "fallback ragged mismatch"

    print("KERNEL_OK")
</pallas_src>

<mosaic_0001>
module attributes {stable_mosaic.version = 11 : i64} {
  func.func @_se_fused_kernel(%arg0: i32, %arg1: memref<1x4x256xf32, #tpu.memory_space<vmem>>, %arg2: memref<4x4xf32, #tpu.memory_space<vmem>>, %arg3: memref<4x4xf32, #tpu.memory_space<vmem>>, %arg4: memref<1x4x256xf32, #tpu.memory_space<vmem>>) attributes {dimension_semantics = [#tpu.dimension_semantics<parallel>], iteration_bounds = array<i64: 2>, scalar_prefetch = 0 : i64, scratch_operands = 0 : i64, tpu.core_type = #tpu.core_type<tc>, window_params = [{transform_indices = @transform_0, window_bounds = array<i64: 1, 4, 256>}, {pipeline_mode = #tpu.pipeline_mode<synchronous>, transform_indices = @transform_1, window_bounds = array<i64: 4, 4>}, {pipeline_mode = #tpu.pipeline_mode<synchronous>, transform_indices = @transform_2, window_bounds = array<i64: 4, 4>}, {transform_indices = @transform_3, window_bounds = array<i64: 1, 4, 256>}]} {
    %c0 = arith.constant 0 : index
    %c0_0 = arith.constant 0 : index
    %c0_1 = arith.constant 0 : index
    %0 = vector.load %arg1[%c0, %c0_0, %c0_1] : memref<1x4x256xf32, #tpu.memory_space<vmem>>, vector<1x4x256xf32>
    %1 = vector.shape_cast %0 : vector<1x4x256xf32> to vector<4x256xf32>
    %cst = arith.constant dense<0.000000e+00> : vector<4xf32>
    %2 = vector.multi_reduction <add>, %1, %cst [1] : vector<4x256xf32> to vector<4xf32>
    %3 = vector.shape_cast %2 : vector<4xf32> to vector<4x1xf32>
    %cst_2 = arith.constant 3.906250e-03 : f32
    %4 = vector.broadcast %cst_2 : f32 to vector<4x1xf32>
    %5 = arith.mulf %3, %4 : vector<4x1xf32>
    %c0_3 = arith.constant 0 : index
    %c0_4 = arith.constant 0 : index
    %6 = vector.load %arg2[%c0_3, %c0_4] : memref<4x4xf32, #tpu.memory_space<vmem>>, vector<4x4xf32>
    %c0_5 = arith.constant 0 : index
    %c0_6 = arith.constant 0 : index
    %7 = vector.load %arg3[%c0_5, %c0_6] : memref<4x4xf32, #tpu.memory_space<vmem>>, vector<4x4xf32>
    %8 = vector.broadcast %5 : vector<4x1xf32> to vector<4x4xf32>
    %9 = arith.mulf %6, %8 : vector<4x4xf32>
    %cst_7 = arith.constant dense<0.000000e+00> : vector<4xf32>
    %10 = vector.multi_reduction <add>, %9, %cst_7 [0] : vector<4x4xf32> to vector<4xf32>
    %11 = vector.shape_cast %10 : vector<4xf32> to vector<1x4xf32>
    %cst_8 = arith.constant 0.000000e+00 : f32
    %12 = vector.broadcast %cst_8 : f32 to vector<1x4xf32>
    %13 = arith.maximumf %11, %12 : vector<1x4xf32>
    %14 = vector.broadcast %13 : vector<1x4xf32> to vector<4x4xf32>
    %15 = arith.mulf %7, %14 : vector<4x4xf32>
    %cst_9 = arith.constant dense<0.000000e+00> : vector<4xf32>
    %16 = vector.multi_reduction <add>, %15, %cst_9 [1] : vector<4x4xf32> to vector<4xf32>
    %17 = vector.shape_cast %16 : vector<4xf32> to vector<4x1xf32>
    %cst_10 = arith.constant 0.000000e+00 : f32
    %18 = vector.broadcast %cst_10 : f32 to vector<4x1xf32>
    %19 = arith.subf %18, %17 : vector<4x1xf32>
    %20 = math.exp %19 : vector<4x1xf32>
    %cst_11 = arith.constant 1.000000e+00 : f32
    %21 = vector.broadcast %cst_11 : f32 to vector<4x1xf32>
    %22 = arith.addf %21, %20 : vector<4x1xf32>
    %cst_12 = arith.constant 1.000000e+00 : f32
    %23 = vector.broadcast %cst_12 : f32 to vector<4x1xf32>
    %24 = arith.divf %23, %22 : vector<4x1xf32>
    %25 = vector.broadcast %24 : vector<4x1xf32> to vector<4x256xf32>
    %26 = arith.mulf %1, %25 : vector<4x256xf32>
    %c0_13 = arith.constant 0 : index
    %c0_14 = arith.constant 0 : index
    %c0_15 = arith.constant 0 : index
    %27 = vector.load %arg4[%c0_13, %c0_14, %c0_15] : memref<1x4x256xf32, #tpu.memory_space<vmem>>, vector<1x4x256xf32>
    %28 = vector.shape_cast %27 : vector<1x4x256xf32> to vector<4x256xf32>
    %29 = vector.shape_cast %26 : vector<4x256xf32> to vector<1x4x256xf32>
    tpu.vector_store %arg4[%c0_13, %c0_14, %c0_15], %29 {strides = array<i32>} : memref<1x4x256xf32, #tpu.memory_space<vmem>>, vector<1x4x256xf32>,
    return
  }
  func.func @transform_0(%arg0: i32) -> (i32, i32, i32) {
    %c0_i32 = arith.constant 0 : i32
    %c0_i32_0 = arith.constant 0 : i32
    %c0_i32_1 = arith.constant 0 : i32
    return %arg0, %c0_i32, %c0_i32_0 : i32, i32, i32
  }
  func.func @transform_1(%arg0: i32) -> (i32, i32) {
    %c0_i32 = arith.constant 0 : i32
    %c0_i32_0 = arith.constant 0 : i32
    %c0_i32_1 = arith.constant 0 : i32
    return %c0_i32, %c0_i32_0 : i32, i32
  }
  func.func @transform_2(%arg0: i32) -> (i32, i32) {
    %c0_i32 = arith.constant 0 : i32
    %c0_i32_0 = arith.constant 0 : i32
    %c0_i32_1 = arith.constant 0 : i32
    return %c0_i32, %c0_i32_0 : i32, i32
  }
  func.func @transform_3(%arg0: i32) -> (i32, i32, i32) {
    %c0_i32 = arith.constant 0 : i32
    %c0_i32_0 = arith.constant 0 : i32
    %c0_i32_1 = arith.constant 0 : i32
    return %arg0, %c0_i32, %c0_i32_0 : i32, i32, i32
  }
}

</mosaic_0001>

<llo_original>
// kernel: tpu_custom_call.1
$region0: #{tpu_custom_call.1}
  #allocation0 [shape = 'u32[]', space=smem, size = 0x4, offset = 0x4, fixed_abs, tag = 'smem constant byte address 0x4 - core index']
  #allocation1 [shape = 'u32[72,128]{1,0:T(1,128)}', space=vmem, size = 0x9000, scoped, tag = 'internal scratch']
  %s0 = inlined_call_operand.hbm [shape: f32[2,4,256], index: 0, kind: input, shape index: {}]
  %s1 = inlined_call_operand.hbm [shape: f32[4,4], index: 1, kind: input, shape index: {}]
  %s2 = inlined_call_operand.hbm [shape: f32[4,4], index: 2, kind: input, shape index: {}]
  %s3 = inlined_call_operand.hbm [shape: f32[2,4,256], index: 3, kind: output, shape index: {}]
  %s4 = sld [smem:[#allocation0]]
  $region57: #{tpu_custom_call.1} parent=0
    _
  %s6 = ssub.s32 1, %s4
  %s7 = scalar_select 0, %s6, %s4
  $region1: #{tpu_custom_call.1} parent=0
    #allocation2 [shape = 'u8[8192]{0}', space=vmem, size = 0x2000, scoped, tag = 'input window, operand 0']
    #allocation3 [shape = 's32[2]{0}', space=sflag, size = 0x8, scoped, tag = 'scoped memory for tpu_custom_call.1']
    #allocation4 [shape = 's32[2]{0}', space=sflag, size = 0x8, scoped, tag = 'scoped memory for tpu_custom_call.1']
    #allocation5 [shape = 'u8[2048]{0}', space=vmem, size = 0x800, scoped, tag = 'input window, operand 1, single buffered']
    #allocation6 [shape = 's32[1]{0}', space=sflag, size = 0x4, scoped, tag = 'scoped memory for tpu_custom_call.1']
    #allocation7 [shape = 'u8[2048]{0}', space=vmem, size = 0x800, scoped, tag = 'input window, operand 2, single buffered']
    #allocation8 [shape = 'u8[8192]{0}', space=vmem, size = 0x2000, scoped, tag = 'output window, operand 0']
    %8 = vsyncpa [#allocation3], 0
    %s9 = scalar_lea.sflag [#allocation3], 1
    %10 = vsyncpa %s9, 0
    %11 = vsyncpa [#allocation6], 0
    %12 = vsyncpa [#allocation4], 0
    %s13 = scalar_lea.sflag [#allocation4], 1
    %14 = vsyncpa %s13, 0
    loop: start=0, step=1, limit=4
    $region2: #{tpu_custom_call.1} parent=1 // loop_pre_header
      _
    $region3: #{tpu_custom_call.1} parent=1 // loop_header
      %s16 = sphi 0, %s20
      %p17 = scmp.ge.s32.totalorder %s16, 4
      %s26 = sphi 0, %s28
      %s29 = sphi 0, %s26
      %s30 = sphi 0, %s29
      %s46 = sphi 0, %s30
      %s50 = sphi 0, %s50
      %s52 = sphi 0, %s50
      %s53 = sphi 0, %s52
      %s67 = sphi 0, %s53
      %s71 = sphi 0, %s71
      %s73 = sphi 0, %s71
      %s74 = sphi 0, %s73
      %s88 = sphi 0, %s74
      %s94 = sphi 0, %s96
      %s97 = sphi 0, %s94
      %s98 = sphi 0, %s97
      %s114 = sphi 0, %s98
    $region4: #{tpu_custom_call.1} parent=1 // loop_header_branch
      %19 = sbr.rel (%p17) target = $region8
    $region5: #{tpu_custom_call.1} parent=1 // loop_body
      %s21 = ssub.s32 %s16, 1
      %s22 = ssub.s32 %s16, 2
      %s23 = sadd.s32 %s16, 1
      %s24 = ssub.s32 %s16, %s23
      %p25 = scmp.eq.s32.totalorder %s24, 0
      %s27 = sadd.s32 %s26, 1
      %s28 = scalar_select %p25, %s26, %s27
      %p31 = pneg %p25
      %p32 = scmp.eq.s32.totalorder %s16, 1
      %p33 = por %p31, %p32
      %p34 = scmp.ne.s32.totalorder %s26, %s29
      %p35 = scmp.eq.s32.totalorder %s16, 0
      %p36 = por %p34, %p35
      %p37 = scmp.ne.s32.totalorder %s26, %s29
      %p38 = scmp.eq.s32.totalorder %s21, 1
      %p39 = por %p37, %p38
      %p40 = scmp.ne.s32.totalorder %s29, %s30
      %p41 = scmp.eq.s32.totalorder %s21, 0
      %p42 = por %p40, %p41
      %p43 = scmp.ne.s32.totalorder %s29, %s30
      %p44 = scmp.eq.s32.totalorder %s22, 1
      %p45 = por %p43, %p44
      %p47 = scmp.ne.s32.totalorder %s30, %s46
      %p48 = scmp.eq.s32.totalorder %s22, 0
      %p49 = por %p47, %p48
      %s51 = sadd.s32 %s50, 1
      %p54 = scmp.eq.s32.totalorder %s16, 1
      %p55 = scmp.ne.s32.totalorder %s50, %s52
      %p56 = scmp.eq.s32.totalorder %s16, 0
      %p57 = por %p55, %p56
      %p58 = scmp.ne.s32.totalorder %s50, %s52
      %p59 = scmp.eq.s32.totalorder %s21, 1
      %p60 = por %p58, %p59
      %p61 = scmp.ne.s32.totalorder %s52, %s53
      %p62 = scmp.eq.s32.totalorder %s21, 0
      %p63 = por %p61, %p62
      %p64 = scmp.ne.s32.totalorder %s52, %s53
      %p65 = scmp.eq.s32.totalorder %s22, 1
      %p66 = por %p64, %p65
      %p68 = scmp.ne.s32.totalorder %s53, %s67
      %p69 = scmp.eq.s32.totalorder %s22, 0
      %p70 = por %p68, %p69
      %s72 = sadd.s32 %s71, 1
      %p75 = scmp.eq.s32.totalorder %s16, 1
      %p76 = scmp.ne.s32.totalorder %s71, %s73
      %p77 = scmp.eq.s32.totalorder %s16, 0
      %p78 = por %p76, %p77
      %p79 = scmp.ne.s32.totalorder %s71, %s73
      %p80 = scmp.eq.s32.totalorder %s21, 1
      %p81 = por %p79, %p80
      %p82 = scmp.ne.s32.totalorder %s73, %s74
      %p83 = scmp.eq.s32.totalorder %s21, 0
      %p84 = por %p82, %p83
      %p85 = scmp.ne.s32.totalorder %s73, %s74
      %p86 = scmp.eq.s32.totalorder %s22, 1
      %p87 = por %p85, %p86
      %p89 = scmp.ne.s32.totalorder %s74, %s88
      %p90 = scmp.eq.s32.totalorder %s22, 0
      %p91 = por %p89, %p90
      %s92 = ssub.s32 %s16, %s23
      %p93 = scmp.eq.s32.totalorder %s92, 0
      %s95 = sadd.s32 %s94, 1
      %s96 = scalar_select %p93, %s94, %s95
      %p99 = pneg %p93
      %p100 = scmp.eq.s32.totalorder %s16, 1
      %p101 = por %p99, %p100
      %p102 = scmp.ne.s32.totalorder %s94, %s97
      %p103 = scmp.eq.s32.totalorder %s16, 0
      %p104 = por %p102, %p103
      %p105 = scmp.ne.s32.totalorder %s94, %s97
      %p106 = scmp.eq.s32.totalorder %s21, 1
      %p107 = por %p105, %p106
      %p108 = scmp.ne.s32.totalorder %s97, %s98
      %p109 = scmp.eq.s32.totalorder %s21, 0
      %p110 = por %p108, %p109
      %p111 = scmp.ne.s32.totalorder %s97, %s98
      %p112 = scmp.eq.s32.totalorder %s22, 1
      %p113 = por %p111, %p112
      %p115 = scmp.ne.s32.totalorder %s98, %s114
      %p116 = scmp.eq.s32.totalorder %s22, 0
      %p117 = por %p115, %p116
      %p118 = scmp.le.s32.totalorder 1, %s16
      %p119 = scmp.lt.s32.totalorder %s16, 3
      %p120 = pnand %p118, %p119
      %p121 = pneg %p120
      // Predicated region
      $region9: #{tpu_custom_call.1} parent=5 // pred_check
        _
      $region10: #{tpu_custom_call.1} parent=5 // pred_check_branch
        %123 = sbr.rel (%p120) target = $region12
      $region11: #{tpu_custom_call.1} parent=5 // pred_region
        %s124 = ssub.s32 %s16, 1
        // Predicated region
        $region13: #{tpu_custom_call.1} parent=11 // pred_check
          %p125 = pneg %p63
        $region14: #{tpu_custom_call.1} parent=11 // pred_check_branch
          %127 = sbr.rel (%p125) target = $region16
        $region15: #{tpu_custom_call.1} parent=11 // pred_region
          %129 = vsyncadd [#allocation6], 0
          %s131 = sshll.u32 %s1, 4
          %s132 = int_to_ptr.hbm [resolvable:$true] %s131
          %s133 = sshll.u32 [#allocation5], 4
          %s134 = int_to_ptr.vmem [resolvable:$true] %s133
          %136 = dma.hbm_to_vmem [thread:$0]  %s132, 64, %s134, [#allocation6]
        $region16: #{tpu_custom_call.1} parent=11 // pred_fallthru
          _
        // Predicated region
        $region17: #{tpu_custom_call.1} parent=11 // pred_check
          %p137 = pneg %p84
        $region18: #{tpu_custom_call.1} parent=11 // pred_check_branch
          %139 = sbr.rel (%p137) target = $region20
        $region19: #{tpu_custom_call.1} parent=11 // pred_region
          %141 = vsyncadd [#allocation6], 0
          %s143 = sshll.u32 %s2, 4
          %s144 = int_to_ptr.hbm [resolvable:$true] %s143
          %s145 = sshll.u32 [#allocation7], 4
          %s146 = int_to_ptr.vmem [resolvable:$true] %s145
          %148 = dma.hbm_to_vmem [thread:$0]  %s144, 64, %s146, [#allocation6]
        $region20: #{tpu_custom_call.1} parent=11 // pred_fallthru
          _
      $region12: #{tpu_custom_call.1} parent=5 // pred_fallthru
        _
      %p149 = scmp.lt.s32.totalorder %s16, 2
      // Predicated region
      $region21: #{tpu_custom_call.1} parent=5 // pred_check
        %p150 = pneg %p149
      $region22: #{tpu_custom_call.1} parent=5 // pred_check_branch
        %152 = sbr.rel (%p150) target = $region24
      $region23: #{tpu_custom_call.1} parent=5 // pred_region
        // Predicated region
        $region25: #{tpu_custom_call.1} parent=23 // pred_check
          %p153 = pneg %p36
        $region26: #{tpu_custom_call.1} parent=23 // pred_check_branch
          %155 = sbr.rel (%p153) target = $region28
        $region27: #{tpu_custom_call.1} parent=23 // pred_region
          %s156 = sand.u32 %s26, 1
          %s157 = scalar_lea.sflag [#allocation3], %s156
          %s158 = sand.u32 %s26, 1
          %s159 = smul.addr %s158, 8
          %s160 = scalar_lea.vmem [#allocation2], %s159
          %162 = vsyncadd %s157, 0
          %s163 = smul.addr %s16, 2
          %s164 = smul.addr %s163, 4
          %s165 = scalar_lea.hbm %s0, %s164
          %s167 = sshll.u32 %s165, 4
          %s168 = int_to_ptr.hbm [resolvable:$true] %s167
          %s169 = sshll.u32 %s160, 4
          %s170 = int_to_ptr.vmem [resolvable:$true] %s169
          %172 = dma.hbm_to_vmem [thread:$0]  %s168, 128, %s170, %s157
        $region28: #{tpu_custom_call.1} parent=23 // pred_fallthru
          _
      $region24: #{tpu_custom_call.1} parent=5 // pred_fallthru
        _
      %p173 = scmp.le.s32.totalorder 1, %s16
      %p174 = scmp.lt.s32.totalorder %s16, 3
      %p175 = pnand %p173, %p174
      %p176 = pneg %p175
      // Predicated region
      $region29: #{tpu_custom_call.1} parent=5 // pred_check
        _
      $region30: #{tpu_custom_call.1} parent=5 // pred_check_branch
        %178 = sbr.rel (%p175) target = $region32
      $region31: #{tpu_custom_call.1} parent=5 // pred_region
        %s179 = ssub.s32 %s16, 1
        %s180 = sand.u32 %s29, 1
        %s181 = scalar_lea.sflag [#allocation3], %s180
        %s182 = sand.u32 %s29, 1
        %s183 = smul.addr %s182, 8
        %s184 = scalar_lea.vmem [#allocation2], %s183
        // Predicated region
        $region33: #{tpu_custom_call.1} parent=31 // pred_check
          %p185 = pneg %p42
        $region34: #{tpu_custom_call.1} parent=31 // pred_check_branch
          %187 = sbr.rel (%p185) target = $region36
        $region35: #{tpu_custom_call.1} parent=31 // pred_region
          %189 = dma.done %s181, 128
        $region36: #{tpu_custom_call.1} parent=31 // pred_fallthru
          _
        // Predicated region
        $region37: #{tpu_custom_call.1} parent=31 // pred_check
          %p190 = pneg %p63
        $region38: #{tpu_custom_call.1} parent=31 // pred_check_branch
          %192 = sbr.rel (%p190) target = $region40
        $region39: #{tpu_custom_call.1} parent=31 // pred_region
          %194 = dma.done [#allocation6], 64
        $region40: #{tpu_custom_call.1} parent=31 // pred_fallthru
          _
        // Predicated region
        $region41: #{tpu_custom_call.1} parent=31 // pred_check
          %p195 = pneg %p84
        $region42: #{tpu_custom_call.1} parent=31 // pred_check_branch
          %197 = sbr.rel (%p195) target = $region44
        $region43: #{tpu_custom_call.1} parent=31 // pred_region
          %199 = dma.done [#allocation6], 64
        $region44: #{tpu_custom_call.1} parent=31 // pred_fallthru
          _
        %s200 = sand.u32 %s29, 1
        %s201 = scalar_lea.sflag [#allocation3], %s200
        %s202 = sand.u32 %s29, 1
        %s203 = smul.addr %s202, 8
        %s204 = scalar_lea.vmem [#allocation2], %s203
        %p205 = pneg %p42
        %p206 = pneg %p39
        %p207 = pneg %p63
        %p208 = pneg %p60
        %p209 = pneg %p84
        %p210 = pneg %p81
        %p211 = pneg %p110
        %p212 = pneg %p107
        %s213 = sand.u32 %s97, 1
        %s214 = scalar_lea.sflag [#allocation4], %s213
        %s215 = sand.u32 %s97, 1
        %s216 = smul.addr %s215, 8
        %s217 = scalar_lea.vmem [#allocation8], %s216
        %v218 = vld [vmem:[%s184] sm:$0xff]
        %220 = vst [vmem:[#allocation1] ss:$2 sm:$0xff] %v218
        %v221 = vld.sshfl [vmem:[#allocation1] sm:$0xff pattern:$0x75316420]
        %v222 = vld.sshfl [vmem:[#allocation1 + $0x8] sm:$0xff pattern:$0x75316420]
        %vm225 = vcmask 1043456
        %v226 = vsel %vm225, %v221, 0.0
        %v227 = vsel %vm225, %v222, 0.0
        %v228 = vadd.f32 %v226, %v227
        %229 = vadd.xlane.f32.xlu0 %v228
        %v230 = vpop.xlane.xlu0 %229
        %v231 = vmul.f32 %v230, 0.00390625
        %v232 = vld [vmem:[#allocation5] sm:$0xf]
        %v233 = vld [vmem:[#allocation7] sm:$0xf]
        %v234 = vmul.f32 %v232, %v231
        %vm235 = vcmask 27648
        %v236 = vsel %vm235, %v234, 0.0
        %v237 = vrot.slane %v236, 4
        %v238 = vadd.f32 %v236, %v237
        %v239 = vrot.slane %v238, 2
        %v240 = vadd.f32 %v238, %v239
        %v241 = vrot.slane %v240, 1
        %v242 = vadd.f32 %v240, %v241
        %v243 = vmax.f32 %v242, 0.0
        %v244 = vmul.f32 %v233, %v243
        %v245 = vsel %vm235, %v244, 0.0
        %246 = vadd.xlane.f32.xlu0 %v245
        %v247 = vpop.xlane.xlu0 %246
        %v248 = vsub.f32 0.0, %v247
        %v249 = vmul.f32 %v248, 1.442695
        %v250 = vpow.pop %v249
        %v251 = vadd.f32 %v250, 1.0
        %v252 = vrcp.pop %v251
        %v253 = vmul.f32 %v251, %v252
        %v254 = vsub.f32 1.0, %v253
        %v255 = vmul.f32 %v252, %v254
        %v256 = vadd.f32 %v252, %v255
        %vm257 = vweird.f32 %v251
        %vm258 = vweird.f32 %v252
        %vm259 = vmor %vm257, %vm258
        %v260 = vsel %vm259, %v252, %v256
        %v261 = vand.u32 2147483647, %v251
        %vm262 = vcmp.eq.f32.partialorder %v261, 8.507059e+37
        %v263 = vand.u32 %v251, 2147483648
        %v264 = vor.u32 1.1754944e-38, %v263
        %v265 = vsel %vm262, %v264, %v260
        %v266 = vmul.f32 1.0, %v265
        %v269 = vunpack.c.l.s4 839922192
        %v270 = vunpack.c.0.s8 %v269
        %v271 = vperm.slane %v266, %v270
        %v273 = vmul.f32 %v218, %v271
        %274 = vst [vmem:[%s217] sm:$0xff] %v273
        %s275 = sand.u32 %s97, 1
        %s276 = scalar_lea.sflag [#allocation4], %s275
        %s277 = sand.u32 %s97, 1
        %s278 = smul.addr %s277, 8
        %s279 = scalar_lea.vmem [#allocation8], %s278
        // Predicated region
        $region45: #{tpu_custom_call.1} parent=31 // pred_check
          %p280 = pneg %p107
        $region46: #{tpu_custom_call.1} parent=31 // pred_check_branch
          %282 = sbr.rel (%p280) target = $region48
        $region47: #{tpu_custom_call.1} parent=31 // pred_region
          %284 = vsyncadd %s276, 0
          %s285 = smul.addr %s21, 2
          %s286 = smul.addr %s285, 4
          %s287 = scalar_lea.hbm %s3, %s286
          %s289 = sshll.u32 %s279, 4
          %s290 = int_to_ptr.vmem [resolvable:$true] %s289
          %s291 = sshll.u32 %s287, 4
          %s292 = int_to_ptr.hbm [resolvable:$true] %s291
          %294 = dma.vmem_to_hbm [thread:$0]  %s290, 128, %s292, %s276
        $region48: #{tpu_custom_call.1} parent=31 // pred_fallthru
          _
      $region32: #{tpu_custom_call.1} parent=5 // pred_fallthru
        _
      %p295 = scmp.le.s32.totalorder 2, %s16
      // Predicated region
      $region49: #{tpu_custom_call.1} parent=5 // pred_check
        %p296 = pneg %p295
      $region50: #{tpu_custom_call.1} parent=5 // pred_check_branch
        %298 = sbr.rel (%p296) target = $region52
      $region51: #{tpu_custom_call.1} parent=5 // pred_region
        %s299 = ssub.s32 %s16, 2
        // Predicated region
        $region53: #{tpu_custom_call.1} parent=51 // pred_check
          %p300 = pneg %p113
        $region54: #{tpu_custom_call.1} parent=51 // pred_check_branch
          %302 = sbr.rel (%p300) target = $region56
        $region55: #{tpu_custom_call.1} parent=51 // pred_region
          %s303 = sand.u32 %s98, 1
          %s304 = scalar_lea.sflag [#allocation4], %s303
          %s305 = sand.u32 %s98, 1
          %s306 = smul.addr %s305, 8
          %s307 = scalar_lea.vmem [#allocation8], %s306
          %309 = dma.done %s304, 128
        $region56: #{tpu_custom_call.1} parent=51 // pred_fallthru
          _
      $region52: #{tpu_custom_call.1} parent=5 // pred_fallthru
        _
    $region6: #{tpu_custom_call.1} parent=1 // loop_footer
      %s20 = sadd.s32 1, %s16
    $region7: #{tpu_custom_call.1} parent=1 // loop_footer_branch
      %15 = sbr.rel target = $region3
    $region8: #{tpu_custom_call.1} parent=1 // loop_exit
      _
    %310 = vsyncpa [#allocation3], 1
    %s311 = scalar_lea.sflag [#allocation3], 1
    %312 = vsyncpa %s311, 1
    %313 = vsyncpa [#allocation6], 1
    %314 = vsyncpa [#allocation4], 1
    %s315 = scalar_lea.sflag [#allocation4], 1
    %316 = vsyncpa %s315, 1

</llo_original>
